<compile_context>
chip_gen: v7x
topology: tpu7x:2x2x1
jax: 0.10.0
libtpu: 0.0.40
codegen_flags: <defaults>
</compile_context>

<pallas_src>
import functools

import numpy as np
import jax
import jax.numpy as jnp
from jax.experimental import pallas as pl
from jax.experimental.pallas import tpu as pltpu


def _round_up(x, m):
    return (x + m - 1) // m * m


# --------------------------------------------------------------------------
# Kernel
# --------------------------------------------------------------------------
def _fused_actor_critic_kernel(layout, n_actions, states_ref, slab_ref, out_ref):
    """Fused actor+critic forward on one batch block.

    layout: static dict describing where each fused (block-diagonal) layer's
            weight rows and bias row live inside the packed slab.
    """
    x = states_ref[...]                                        # (bm, in_dim)

    # Hidden layers: one block-diagonal matmul covers actor AND critic.
    for (w_start, k_rows, b_row) in layout["hidden"]:
        w = slab_ref[w_start:w_start + k_rows, :]              # (k_rows, W)
        b = slab_ref[b_row:b_row + 1, :]                       # (1, W)
        x = jnp.tanh(jnp.dot(x, w, preferred_element_type=jnp.float32) + b)

    # Output layer: logits in lanes [0, n_actions), value in lane n_actions.
    w_start, k_rows, b_row = layout["out"]
    w = slab_ref[w_start:w_start + k_rows, :]
    b = slab_ref[b_row:b_row + 1, :]
    o = jnp.dot(x, w, preferred_element_type=jnp.float32) + b  # (bm, W)

    # Keep only the narrow useful lane range for the softmax + store.
    out_w = out_ref.shape[-1]
    o = o[:, :out_w]                                           # (bm, out_w)

    # Lane-masked, numerically stable softmax over the logit lanes only.
    lane = jax.lax.broadcasted_iota(jnp.int32, o.shape, 1)
    is_logit = lane < n_actions
    masked = jnp.where(is_logit, o, -1e30)
    m = jnp.max(masked, axis=-1, keepdims=True)
    e = jnp.exp(masked - m)            # non-logit lanes underflow exactly to 0
    denom = jnp.sum(e, axis=-1, keepdims=True)
    policy = e / denom                 # exact divide: rows sum to 1

    # (policy | value | zeros) merged into one narrow lane-dense row.
    merged = jnp.where(is_logit, policy,
                       jnp.where(lane == n_actions, o, 0.0))
    out_ref[...] = merged.astype(out_ref.dtype)


# --------------------------------------------------------------------------
# Host-side packing of the parameter tensors into one lane-dense slab
# --------------------------------------------------------------------------
def pack_actor_critic_params(params, in_dim, hidden_dims, n_actions):
    """Pack actor/critic weights+biases into one (ROWS, W) f32 slab.

    Lane convention:
      * hidden layers: actor in lanes [0, HW), critic in lanes [HW, 2*HW),
        HW = round_up(max(hidden_dims), 8)  -> W = 2*HW (64 for hidden=32)
      * output layer: actor logits in lanes [0, n_actions), value in lane
        n_actions.
    All section row offsets are multiples of 8 (sublane aligned); layer-0
    contraction uses the true in_dim so states need no wrapper-side padding.
    """
    hidden_dims = list(hidden_dims)
    n_hidden = len(hidden_dims)
    n_layers = n_hidden + 1

    HW = _round_up(max(hidden_dims), 8)
    out_w = _round_up(n_actions + 1, 8)
    W = max(2 * HW, out_w)                       # slab lane width

    # Contraction-row extent of each fused layer.
    k_dims = [in_dim] + [2 * HW] * n_hidden
    w_starts, r = [], 0
    for k in k_dims:
        w_starts.append(r)
        r += _round_up(k, 8)
    bias_start = r                               # multiple of 8
    total_rows = bias_start + 8 * n_layers       # each bias gets an 8-row block

    slab = np.zeros((total_rows, W), dtype=np.float32)
    for i in range(n_layers):
        aw = np.asarray(params[f"aw{i}"], np.float32)
        ab = np.asarray(params[f"ab{i}"], np.float32).reshape(-1)
        cw = np.asarray(params[f"cw{i}"], np.float32)
        cb = np.asarray(params[f"cb{i}"], np.float32).reshape(-1)

        ws = w_starts[i]
        a_in_off = 0
        c_in_off = 0 if i == 0 else HW           # layer 0 shares input rows
        a_out_off = 0
        c_out_off = HW if i < n_hidden else n_actions

        slab[ws + a_in_off: ws + a_in_off + aw.shape[0],
             a_out_off: a_out_off + aw.shape[1]] = aw
        slab[ws + c_in_off: ws + c_in_off + cw.shape[0],
             c_out_off: c_out_off + cw.shape[1]] = cw

        b_row = bias_start + 8 * i
        slab[b_row, a_out_off: a_out_off + ab.shape[0]] = ab
        slab[b_row, c_out_off: c_out_off + cb.shape[0]] = cb

    layout = {
        "width": W,
        "out_width": out_w,
        "hidden": [(w_starts[i], k_dims[i], bias_start + 8 * i)
                   for i in range(n_hidden)],
        "out": (w_starts[n_hidden], k_dims[n_hidden], bias_start + 8 * n_hidden),
    }
    return jnp.asarray(slab), layout


# --------------------------------------------------------------------------
# Wrapper
# --------------------------------------------------------------------------
def actor_critic_forward(states, slab, layout, n_actions, *, block_b=None):
    """states: (B, in_dim) f32, slab/layout from pack_actor_critic_params."""
    B, in_dim = states.shape
    rows, width = slab.shape
    out_w = layout["out_width"]

    # Layer-0 contraction must match the true feature dim (no padding copies).
    k0 = layout["hidden"][0][1] if layout["hidden"] else layout["out"][1]
    assert in_dim == k0, "states feature dim must match the packed layout"

    if block_b is None:
        max_block = 4096                  # ~ (4096*in_dim + 4096*out_w)*4B + slab
        if B <= 2 * max_block:
            # Guarantee >= 2 grid steps when possible so "parallel" can shard
            # across v7x's two TensorCores; 8-aligned, ragged last block is OK.
            block_b = min(B, _round_up(-(-B // 2), 8))
        else:
            block_b = max_block
    grid = (pl.cdiv(B, block_b),)

    out = pl.pallas_call(
        functools.partial(_fused_actor_critic_kernel, layout, n_actions),
        out_shape=jax.ShapeDtypeStruct((B, out_w), jnp.float32),
        grid_spec=pltpu.PrefetchScalarGridSpec(
            num_scalar_prefetch=0,
            grid=grid,
            in_specs=[
                pl.BlockSpec((block_b, in_dim), lambda i: (i, 0)),
                # Constant index_map -> weight slab stays VMEM-resident
                # across batch blocks (single DMA for all parameters).
                pl.BlockSpec((rows, width), lambda i: (0, 0)),
            ],
            out_specs=pl.BlockSpec((block_b, out_w), lambda i: (i, 0)),
        ),
        compiler_params=pltpu.CompilerParams(
            dimension_semantics=("parallel",)),
    )(states, slab)

    policy = out[:, :n_actions]
    value = out[:, n_actions:n_actions + 1]
    return policy, value


# --------------------------------------------------------------------------
# Parameter init (matches torch nn.Linear layer shapes; weights stored (in, out))
# --------------------------------------------------------------------------
def init_params(key, in_dim, hidden_dims, n_actions):
    dims_actor = [in_dim] + list(hidden_dims) + [n_actions]
    dims_critic = [in_dim] + list(hidden_dims) + [1]
    params = {}
    keys = jax.random.split(key, 2 * (len(hidden_dims) + 1))
    k_idx = 0
    for prefix, dims in (("a", dims_actor), ("c", dims_critic)):
        for i in range(len(dims) - 1):
            fan_in, fan_out = dims[i], dims[i + 1]
            bound = 1.0 / float(np.sqrt(fan_in))
            w = jax.random.uniform(keys[k_idx], (fan_in, fan_out),
                                   minval=-bound, maxval=bound, dtype=jnp.float32)
            b = jax.random.uniform(jax.random.fold_in(keys[k_idx], 1),
                                   (1, fan_out), minval=-bound, maxval=bound,
                                   dtype=jnp.float32)
            params[f"{prefix}w{i}"] = w
            params[f"{prefix}b{i}"] = b
            k_idx += 1
    return params


def reference_forward(states, params, n_hidden):
    """Pure-JAX reference (unfused) for validation."""
    x = states
    for i in range(n_hidden):
        x = jnp.tanh(x @ params[f"aw{i}"] + params[f"ab{i}"])
    logits = x @ params[f"aw{n_hidden}"] + params[f"ab{n_hidden}"]
    policy = jax.nn.softmax(logits, axis=-1)
    c = states
    for i in range(n_hidden):
        c = jnp.tanh(c @ params[f"cw{i}"] + params[f"cb{i}"])
    value = c @ params[f"cw{n_hidden}"] + params[f"cb{n_hidden}"]
    return policy, value


if __name__ == "__main__":
    # input_shape=(16,), hidden_layer_dims=[32, 32], output_shape=(4,), batch=8
    B, IN_DIM, HIDDEN, N_ACTIONS = 8, 16, (32, 32), 4

    key = jax.random.PRNGKey(0)
    k_states, k_params = jax.random.split(key)
    states = jax.random.normal(k_states, (B, IN_DIM), dtype=jnp.float32)
    params = init_params(k_params, IN_DIM, HIDDEN, N_ACTIONS)
    slab, layout = pack_actor_critic_params(params, IN_DIM, HIDDEN, N_ACTIONS)

    policy, value = actor_critic_forward(states, slab, layout, N_ACTIONS)
    jax.block_until_ready((policy, value))

    ref_policy, ref_value = reference_forward(states, params, len(HIDDEN))
    assert policy.shape == (B, N_ACTIONS)
    assert value.shape == (B, 1)
    assert jnp.allclose(policy, ref_policy, atol=2e-3, rtol=2e-3)
    assert jnp.allclose(value, ref_value, atol=2e-3, rtol=2e-3)
    # Exact divide in the kernel -> rows sum to 1 up to f32 rounding.
    assert jnp.allclose(jnp.sum(policy, axis=-1), 1.0, atol=1e-4)

    print("KERNEL_OK")
</pallas_src>

<mosaic_0001>
module attributes {stable_mosaic.version = 11 : i64} {
  func.func @_fused_actor_critic_kernel(%arg0: i32, %arg1: memref<8x16xf32, #tpu.memory_space<vmem>>, %arg2: memref<168x64xf32, #tpu.memory_space<vmem>>, %arg3: memref<8x8xf32, #tpu.memory_space<vmem>>) attributes {dimension_semantics = [#tpu.dimension_semantics<parallel>], iteration_bounds = array<i64: 1>, scalar_prefetch = 0 : i64, scratch_operands = 0 : i64, tpu.core_type = #tpu.core_type<tc>, window_params = [{transform_indices = @transform_0, window_bounds = array<i64: 8, 16>}, {pipeline_mode = #tpu.pipeline_mode<synchronous>, transform_indices = @transform_1, window_bounds = array<i64: 168, 64>}, {transform_indices = @transform_2, window_bounds = array<i64: 8, 8>}]} {
    %c0 = arith.constant 0 : index
    %c0_0 = arith.constant 0 : index
    %0 = vector.load %arg1[%c0, %c0_0] : memref<8x16xf32, #tpu.memory_space<vmem>>, vector<8x16xf32>
    %c0_1 = arith.constant 0 : index
    %c0_2 = arith.constant 0 : index
    %1 = vector.load %arg2[%c0_1, %c0_2] : memref<168x64xf32, #tpu.memory_space<vmem>>, vector<16x64xf32>
    %c144 = arith.constant 144 : index
    %c0_3 = arith.constant 0 : index
    %2 = vector.load %arg2[%c144, %c0_3] : memref<168x64xf32, #tpu.memory_space<vmem>>, vector<1x64xf32>
    %cst = arith.constant dense<0.000000e+00> : vector<8x64xf32>
    %3 = tpu.matmul %0, %1, %cst {dimension_numbers = #tpu.dot_dimension_numbers<[1], [0], [0], [1], [0, 0, 1, 1], [], []>} : vector<8x16xf32>, vector<16x64xf32>, vector<8x64xf32> -> vector<8x64xf32>
    %4 = vector.broadcast %2 : vector<1x64xf32> to vector<8x64xf32>
    %5 = arith.addf %3, %4 : vector<8x64xf32>
    %6 = math.tanh %5 : vector<8x64xf32>
    %c16 = arith.constant 16 : index
    %c0_4 = arith.constant 0 : index
    %7 = vector.load %arg2[%c16, %c0_4] : memref<168x64xf32, #tpu.memory_space<vmem>>, vector<64x64xf32>
    %c152 = arith.constant 152 : index
    %c0_5 = arith.constant 0 : index
    %8 = vector.load %arg2[%c152, %c0_5] : memref<168x64xf32, #tpu.memory_space<vmem>>, vector<1x64xf32>
    %cst_6 = arith.constant dense<0.000000e+00> : vector<8x64xf32>
    %9 = tpu.matmul %6, %7, %cst_6 {dimension_numbers = #tpu.dot_dimension_numbers<[1], [0], [0], [1], [0, 0, 1, 1], [], []>} : vector<8x64xf32>, vector<64x64xf32>, vector<8x64xf32> -> vector<8x64xf32>
    %10 = vector.broadcast %8 : vector<1x64xf32> to vector<8x64xf32>
    %11 = arith.addf %9, %10 : vector<8x64xf32>
    %12 = math.tanh %11 : vector<8x64xf32>
    %c80 = arith.constant 80 : index
    %c0_7 = arith.constant 0 : index
    %13 = vector.load %arg2[%c80, %c0_7] : memref<168x64xf32, #tpu.memory_space<vmem>>, vector<64x64xf32>
    %c160 = arith.constant 160 : index
    %c0_8 = arith.constant 0 : index
    %14 = vector.load %arg2[%c160, %c0_8] : memref<168x64xf32, #tpu.memory_space<vmem>>, vector<1x64xf32>
    %cst_9 = arith.constant dense<0.000000e+00> : vector<8x64xf32>
    %15 = tpu.matmul %12, %13, %cst_9 {dimension_numbers = #tpu.dot_dimension_numbers<[1], [0], [0], [1], [0, 0, 1, 1], [], []>} : vector<8x64xf32>, vector<64x64xf32>, vector<8x64xf32> -> vector<8x64xf32>
    %16 = vector.broadcast %14 : vector<1x64xf32> to vector<8x64xf32>
    %17 = arith.addf %15, %16 : vector<8x64xf32>
    %18 = vector.extract_strided_slice %17 {offsets = [0, 0], sizes = [8, 8], strides = [1, 1]} : vector<8x64xf32> to vector<8x8xf32>
    %19 = tpu.iota {dimensions = array<i32: 1>} : vector<8x8xi32>
    %c4_i32 = arith.constant 4 : i32
    %20 = vector.broadcast %c4_i32 : i32 to vector<8x8xi32>
    %21 = arith.cmpi slt, %19, %20 : vector<8x8xi32>
    %cst_10 = arith.constant -1.000000e+30 : f32
    %22 = vector.broadcast %cst_10 : f32 to vector<8x8xf32>
    %23 = arith.select %21, %18, %22 : vector<8x8xi1>, vector<8x8xf32>
    %cst_11 = arith.constant dense<0xFF800000> : vector<8xf32>
    %24 = vector.multi_reduction <maximumf>, %23, %cst_11 [1] : vector<8x8xf32> to vector<8xf32>
    %25 = vector.shape_cast %24 : vector<8xf32> to vector<8x1xf32>
    %26 = vector.broadcast %25 : vector<8x1xf32> to vector<8x8xf32>
    %27 = arith.subf %23, %26 : vector<8x8xf32>
    %28 = math.exp %27 : vector<8x8xf32>
    %cst_12 = arith.constant dense<0.000000e+00> : vector<8xf32>
    %29 = vector.multi_reduction <add>, %28, %cst_12 [1] : vector<8x8xf32> to vector<8xf32>
    %30 = vector.shape_cast %29 : vector<8xf32> to vector<8x1xf32>
    %31 = vector.broadcast %30 : vector<8x1xf32> to vector<8x8xf32>
    %32 = arith.divf %28, %31 : vector<8x8xf32>
    %c4_i32_13 = arith.constant 4 : i32
    %33 = vector.broadcast %c4_i32_13 : i32 to vector<8x8xi32>
    %34 = arith.cmpi eq, %19, %33 : vector<8x8xi32>
    %cst_14 = arith.constant 0.000000e+00 : f32
    %35 = vector.broadcast %cst_14 : f32 to vector<8x8xf32>
    %36 = arith.select %34, %18, %35 : vector<8x8xi1>, vector<8x8xf32>
    %37 = arith.select %21, %32, %36 : vector<8x8xi1>, vector<8x8xf32>
    %c0_15 = arith.constant 0 : index
    %c0_16 = arith.constant 0 : index
    %38 = vector.load %arg3[%c0_15, %c0_16] : memref<8x8xf32, #tpu.memory_space<vmem>>, vector<8x8xf32>
    tpu.vector_store %arg3[%c0_15, %c0_16], %37 {strides = array<i32>} : memref<8x8xf32, #tpu.memory_space<vmem>>, vector<8x8xf32>,
    return
  }
  func.func @transform_0(%arg0: i32) -> (i32, i32) {
    %c0_i32 = arith.constant 0 : i32
    %c0_i32_0 = arith.constant 0 : i32
    return %arg0, %c0_i32 : i32, i32
  }
  func.func @transform_1(%arg0: i32) -> (i32, i32) {
    %c0_i32 = arith.constant 0 : i32
    %c0_i32_0 = arith.constant 0 : i32
    %c0_i32_1 = arith.constant 0 : i32
    return %c0_i32, %c0_i32_0 : i32, i32
  }
  func.func @transform_2(%arg0: i32) -> (i32, i32) {
    %c0_i32 = arith.constant 0 : i32
    %c0_i32_0 = arith.constant 0 : i32
    return %arg0, %c0_i32 : i32, i32
  }
}

</mosaic_0001>

<llo_original>
// kernel: tpu_custom_call.1
$region0: #{tpu_custom_call.1}
  #allocation0 [shape = 'u32[]', space=smem, size = 0x4, offset = 0x4, fixed_abs, tag = 'smem constant byte address 0x4 - core index']
  #allocation1 [shape = 'u32[144,128]{1,0:T(1,128)}', space=vmem, size = 0x12000, scoped, tag = 'internal scratch']
  %s0 = inlined_call_operand.vmem [shape: f32[8,16], index: 0, kind: input, shape index: {}]
  %s1 = inlined_call_operand.vmem [shape: f32[168,64], index: 1, kind: input, shape index: {}]
  %s2 = inlined_call_operand.hbm [shape: f32[8,8], index: 2, kind: output, shape index: {}]
  %s3 = sld [smem:[#allocation0]]
  $region18: #{tpu_custom_call.1} parent=0
    _
  %s5 = ssub.s32 1, %s3
  %s6 = scalar_select 0, %s5, %s3
  $region1: #{tpu_custom_call.1} parent=0
    #allocation2 [shape = 'u8[4096]{0}', space=vmem, size = 0x1000, scoped, tag = 'output window, operand 0, single buffered']
    #allocation3 [shape = 's32[1]{0}', space=sflag, size = 0x4, scoped, tag = 'scoped memory for tpu_custom_call.1']
    %7 = vsyncpa [#allocation3], 0
    // Predicated region
    $region2: #{tpu_custom_call.1} parent=1 // pred_check
      _
    $region3: #{tpu_custom_call.1} parent=1 // pred_check_branch
      %9 = sbr.rel (0) target = $region5
    $region4: #{tpu_custom_call.1} parent=1 // pred_region
      _
    $region5: #{tpu_custom_call.1} parent=1 // pred_fallthru
      _
    // Predicated region
    $region6: #{tpu_custom_call.1} parent=1 // pred_check
      _
    $region7: #{tpu_custom_call.1} parent=1 // pred_check_branch
      %11 = sbr.rel (0) target = $region9
    $region8: #{tpu_custom_call.1} parent=1 // pred_region
      _
    $region9: #{tpu_custom_call.1} parent=1 // pred_fallthru
      _
    %v12 = vld [vmem:[%s0] sm:$0xff]
    %v13 = vld [vmem:[%s1] sm:$0xff]
    %v14 = vld [vmem:[%s1 + $0x8] sm:$0xff]
    %v15 = vld [vmem:[%s1 + $0x90] sm:$0x1]
    %v16 = vlaneseq
    %v17 = vshrl.u32 %v16, 7
    %v18 = vsub.s32 0, %v17
    %v19 = vrot.slane %v15, %v18
    %vm20 = vcmask 130048
    %v22 = vsel %vm20, %v12, 0
    %24 = vmatprep.subr.mxu0 0.0
    %25 = vmatpush1.msra.mxu0 %v13
    %26 = vmatprep.subr.mxu0 0.0
    %27 = vmatpush1.msra.mxu0 %v14
    %28 = vmatprep.subr.mxu0 0.0
    %29 = vmatpush1.msra.mxu0 0.0
    %30 = vmatprep.subr.mxu0 0.0
    %31 = vmatpush1.msra.mxu0 0.0
    %32 = vmatprep.subr.mxu0 0.0
    %33 = vmatpush1.msra.mxu0 0.0
    %34 = vmatprep.subr.mxu0 0.0
    %35 = vmatpush1.msra.mxu0 0.0
    %36 = vmatprep.subr.mxu0 0.0
    %37 = vmatpush1.msra.mxu0 0.0
    %38 = vmatprep.subr.mxu0 0.0
    %39 = vmatpush1.msra.mxu0 0.0
    %40 = vmatprep.subr.mxu0 0.0
    %41 = vmatpush1.msra.mxu0 0.0
    %42 = vmatprep.subr.mxu0 0.0
    %43 = vmatpush1.msra.mxu0 0.0
    %44 = vmatprep.subr.mxu0 0.0
    %45 = vmatpush1.msra.mxu0 0.0
    %46 = vmatprep.subr.mxu0 0.0
    %47 = vmatpush1.msra.mxu0 0.0
    %48 = vmatprep.subr.mxu0 0.0
    %49 = vmatpush1.msra.mxu0 0.0
    %50 = vmatprep.subr.mxu0 0.0
    %51 = vmatpush1.msra.mxu0 0.0
    %52 = vmatprep.subr.mxu0 0.0
    %53 = vmatpush1.msra.mxu0 0.0
    %54 = vmatprep.subr.mxu0 0.0
    %55 = vmatpush1.msra.mxu0 0.0
    %56 = vmatprep.subr.mxu0 0.0
    %57 = vmatpush1.msra.mxu0 0.0
    %58 = vmatprep.subr.mxu0 0.0
    %59 = vmatpush1.msra.mxu0 0.0
    %60 = vmatprep.subr.mxu0 0.0
    %61 = vmatpush1.msra.mxu0 0.0
    %62 = vmatprep.subr.mxu0 0.0
    %63 = vmatpush1.msra.mxu0 0.0
    %64 = vmatprep.subr.mxu0 0.0
    %65 = vmatpush1.msra.mxu0 0.0
    %66 = vmatprep.subr.mxu0 0.0
    %67 = vmatpush1.msra.mxu0 0.0
    %68 = vmatprep.subr.mxu0 0.0
    %69 = vmatpush1.msra.mxu0 0.0
    %70 = vmatprep.subr.mxu0 0.0
    %71 = vmatpush1.msra.mxu0 0.0
    %72 = vmatprep.subr.mxu0 0.0
    %73 = vmatpush1.msra.mxu0 0.0
    %74 = vmatprep.subr.mxu0 0.0
    %75 = vmatpush1.msra.mxu0 0.0
    %76 = vmatprep.subr.mxu0 0.0
    %77 = vmatpush1.msra.mxu0 0.0
    %78 = vmatprep.subr.mxu0 0.0
    %79 = vmatpush1.msra.mxu0 0.0
    %80 = vmatprep.subr.mxu0 0.0
    %81 = vmatpush1.msra.mxu0 0.0
    %82 = vmatprep.subr.mxu0 0.0
    %83 = vmatpush1.msra.mxu0 0.0
    %84 = vmatprep.subr.mxu0 0.0
    %85 = vmatpush1.msra.mxu0 0.0
    %86 = vmatprep.subr.mxu0 0.0
    %87 = vmatpush1.msra.mxu0 0.0
    %88 = vmatprep.mubr.f32.mxu0 0.0
    %89 = vmatmul.mubr.f32.gmra.mrb[0].mxu0 %v22
    %v90 = vpop.f32.mrb[0].mxu0
    %v91 = vadd.f32 %v19, %v90
    %v92 = vpop.f32.mrb[0].mxu0
    %93 = vdwg.mxu0
    %v94 = vtanh.pop %v91
    %v95 = vld [vmem:[%s1 + $0x10] sm:$0xff]
    %v96 = vld [vmem:[%s1 + $0x18] sm:$0xff]
    %v97 = vld [vmem:[%s1 + $0x20] sm:$0xff]
    %v98 = vld [vmem:[%s1 + $0x28] sm:$0xff]
    %v99 = vld [vmem:[%s1 + $0x30] sm:$0xff]
    %v100 = vld [vmem:[%s1 + $0x38] sm:$0xff]
    %v101 = vld [vmem:[%s1 + $0x40] sm:$0xff]
    %v102 = vld [vmem:[%s1 + $0x48] sm:$0xff]
    %v103 = vld [vmem:[%s1 + $0x98] sm:$0x1]
    %v104 = vlaneseq
    %v105 = vshrl.u32 %v104, 7
    %v106 = vsub.s32 0, %v105
    %v107 = vrot.slane %v103, %v106
    %vm108 = vcmask 523264
    %v110 = vsel %vm108, %v94, 0
    %112 = vmatprep.subr.mxu0 0.0
    %113 = vmatpush1.msra.mxu0 %v95
    %114 = vmatprep.subr.mxu0 0.0
    %115 = vmatpush1.msra.mxu0 %v96
    %116 = vmatprep.subr.mxu0 0.0
    %117 = vmatpush1.msra.mxu0 %v97
    %118 = vmatprep.subr.mxu0 0.0
    %119 = vmatpush1.msra.mxu0 %v98
    %120 = vmatprep.subr.mxu0 0.0
    %121 = vmatpush1.msra.mxu0 %v99
    %122 = vmatprep.subr.mxu0 0.0
    %123 = vmatpush1.msra.mxu0 %v100
    %124 = vmatprep.subr.mxu0 0.0
    %125 = vmatpush1.msra.mxu0 %v101
    %126 = vmatprep.subr.mxu0 0.0
    %127 = vmatpush1.msra.mxu0 %v102
    %128 = vmatprep.subr.mxu0 0.0
    %129 = vmatpush1.msra.mxu0 0.0
    %130 = vmatprep.subr.mxu0 0.0
    %131 = vmatpush1.msra.mxu0 0.0
    %132 = vmatprep.subr.mxu0 0.0
    %133 = vmatpush1.msra.mxu0 0.0
    %134 = vmatprep.subr.mxu0 0.0
    %135 = vmatpush1.msra.mxu0 0.0
    %136 = vmatprep.subr.mxu0 0.0
    %137 = vmatpush1.msra.mxu0 0.0
    %138 = vmatprep.subr.mxu0 0.0
    %139 = vmatpush1.msra.mxu0 0.0
    %140 = vmatprep.subr.mxu0 0.0
    %141 = vmatpush1.msra.mxu0 0.0
    %142 = vmatprep.subr.mxu0 0.0
    %143 = vmatpush1.msra.mxu0 0.0
    %144 = vmatprep.subr.mxu0 0.0
    %145 = vmatpush1.msra.mxu0 0.0
    %146 = vmatprep.subr.mxu0 0.0
    %147 = vmatpush1.msra.mxu0 0.0
    %148 = vmatprep.subr.mxu0 0.0
    %149 = vmatpush1.msra.mxu0 0.0
    %150 = vmatprep.subr.mxu0 0.0
    %151 = vmatpush1.msra.mxu0 0.0
    %152 = vmatprep.subr.mxu0 0.0
    %153 = vmatpush1.msra.mxu0 0.0
    %154 = vmatprep.subr.mxu0 0.0
    %155 = vmatpush1.msra.mxu0 0.0
    %156 = vmatprep.subr.mxu0 0.0
    %157 = vmatpush1.msra.mxu0 0.0
    %158 = vmatprep.subr.mxu0 0.0
    %159 = vmatpush1.msra.mxu0 0.0
    %160 = vmatprep.subr.mxu0 0.0
    %161 = vmatpush1.msra.mxu0 0.0
    %162 = vmatprep.subr.mxu0 0.0
    %163 = vmatpush1.msra.mxu0 0.0
    %164 = vmatprep.subr.mxu0 0.0
    %165 = vmatpush1.msra.mxu0 0.0
    %166 = vmatprep.subr.mxu0 0.0
    %167 = vmatpush1.msra.mxu0 0.0
    %168 = vmatprep.subr.mxu0 0.0
    %169 = vmatpush1.msra.mxu0 0.0
    %170 = vmatprep.subr.mxu0 0.0
    %171 = vmatpush1.msra.mxu0 0.0
    %172 = vmatprep.subr.mxu0 0.0
    %173 = vmatpush1.msra.mxu0 0.0
    %174 = vmatprep.subr.mxu0 0.0
    %175 = vmatpush1.msra.mxu0 0.0
    %176 = vmatprep.mubr.f32.mxu0 0.0
    %177 = vmatmul.mubr.f32.gmra.mrb[0].mxu0 %v110
    %v178 = vpop.f32.mrb[0].mxu0
    %v179 = vadd.f32 %v107, %v178
    %v180 = vpop.f32.mrb[0].mxu0
    %181 = vdwg.mxu0
    %v182 = vtanh.pop %v179
    %v183 = vld [vmem:[%s1 + $0x50] sm:$0xff]
    %v184 = vld [vmem:[%s1 + $0x58] sm:$0xff]
    %v185 = vld [vmem:[%s1 + $0x60] sm:$0xff]
    %v186 = vld [vmem:[%s1 + $0x68] sm:$0xff]
    %v187 = vld [vmem:[%s1 + $0x70] sm:$0xff]
    %v188 = vld [vmem:[%s1 + $0x78] sm:$0xff]
    %v189 = vld [vmem:[%s1 + $0x80] sm:$0xff]
    %v190 = vld [vmem:[%s1 + $0x88] sm:$0xff]
    %v191 = vld [vmem:[%s1 + $0xa0] sm:$0x1]
    %v192 = vlaneseq
    %v193 = vshrl.u32 %v192, 7
    %v194 = vsub.s32 0, %v193
    %v195 = vrot.slane %v191, %v194
    %v197 = vsel %vm108, %v182, 0
    %199 = vmatprep.subr.mxu0 0.0
    %200 = vmatpush1.msra.mxu0 %v183
    %201 = vmatprep.subr.mxu0 0.0
    %202 = vmatpush1.msra.mxu0 %v184
    %203 = vmatprep.subr.mxu0 0.0
    %204 = vmatpush1.msra.mxu0 %v185
    %205 = vmatprep.subr.mxu0 0.0
    %206 = vmatpush1.msra.mxu0 %v186
    %207 = vmatprep.subr.mxu0 0.0
    %208 = vmatpush1.msra.mxu0 %v187
    %209 = vmatprep.subr.mxu0 0.0
    %210 = vmatpush1.msra.mxu0 %v188
    %211 = vmatprep.subr.mxu0 0.0
    %212 = vmatpush1.msra.mxu0 %v189
    %213 = vmatprep.subr.mxu0 0.0
    %214 = vmatpush1.msra.mxu0 %v190
    %215 = vmatprep.subr.mxu0 0.0
    %216 = vmatpush1.msra.mxu0 0.0
    %217 = vmatprep.subr.mxu0 0.0
    %218 = vmatpush1.msra.mxu0 0.0
    %219 = vmatprep.subr.mxu0 0.0
    %220 = vmatpush1.msra.mxu0 0.0
    %221 = vmatprep.subr.mxu0 0.0
    %222 = vmatpush1.msra.mxu0 0.0
    %223 = vmatprep.subr.mxu0 0.0
    %224 = vmatpush1.msra.mxu0 0.0
    %225 = vmatprep.subr.mxu0 0.0
    %226 = vmatpush1.msra.mxu0 0.0
    %227 = vmatprep.subr.mxu0 0.0
    %228 = vmatpush1.msra.mxu0 0.0
    %229 = vmatprep.subr.mxu0 0.0
    %230 = vmatpush1.msra.mxu0 0.0
    %231 = vmatprep.subr.mxu0 0.0
    %232 = vmatpush1.msra.mxu0 0.0
    %233 = vmatprep.subr.mxu0 0.0
    %234 = vmatpush1.msra.mxu0 0.0
    %235 = vmatprep.subr.mxu0 0.0
    %236 = vmatpush1.msra.mxu0 0.0
    %237 = vmatprep.subr.mxu0 0.0
    %238 = vmatpush1.msra.mxu0 0.0
    %239 = vmatprep.subr.mxu0 0.0
    %240 = vmatpush1.msra.mxu0 0.0
    %241 = vmatprep.subr.mxu0 0.0
    %242 = vmatpush1.msra.mxu0 0.0
    %243 = vmatprep.subr.mxu0 0.0
    %244 = vmatpush1.msra.mxu0 0.0
    %245 = vmatprep.subr.mxu0 0.0
    %246 = vmatpush1.msra.mxu0 0.0
    %247 = vmatprep.subr.mxu0 0.0
    %248 = vmatpush1.msra.mxu0 0.0
    %249 = vmatprep.subr.mxu0 0.0
    %250 = vmatpush1.msra.mxu0 0.0
    %251 = vmatprep.subr.mxu0 0.0
    %252 = vmatpush1.msra.mxu0 0.0
    %253 = vmatprep.subr.mxu0 0.0
    %254 = vmatpush1.msra.mxu0 0.0
    %255 = vmatprep.subr.mxu0 0.0
    %256 = vmatpush1.msra.mxu0 0.0
    %257 = vmatprep.subr.mxu0 0.0
    %258 = vmatpush1.msra.mxu0 0.0
    %259 = vmatprep.subr.mxu0 0.0
    %260 = vmatpush1.msra.mxu0 0.0
    %261 = vmatprep.subr.mxu0 0.0
    %262 = vmatpush1.msra.mxu0 0.0
    %263 = vmatprep.mubr.f32.mxu0 0.0
    %264 = vmatmul.mubr.f32.gmra.mrb[0].mxu0 %v197
    %v265 = vpop.f32.mrb[0].mxu0
    %v266 = vadd.f32 %v195, %v265
    %v267 = vpop.f32.mrb[0].mxu0
    %268 = vdwg.mxu0
    %v269 = vlaneseq
    %v270 = vand.u32 %v269, 127
    %vm271 = vcmp.lt.s32.totalorder %v270, 4
    %v272 = vsel %vm271, %v266, -1e+30
    %vm273 = vcmask 64512
    %v274 = vsel %vm273, %v272, -inf
    %275 = vmax.xlane.f32.xlu0 %v274
    %v276 = vpop.xlane.xlu0 %275
    %v277 = vsub.f32 %v272, %v276
    %v278 = vmul.f32 %v277, 1.442695
    %v279 = vpow.pop %v278
    %v280 = vsel %vm273, %v279, 0.0
    %281 = vadd.xlane.f32.xlu0 %v280
    %v282 = vpop.xlane.xlu0 %281
    %v283 = vrcp.pop %v282
    %v284 = vmul.f32 %v279, %v283
    %vm285 = vcmp.eq.s32.totalorder %v270, 4
    %v286 = vsel %vm285, %v266, 0.0
    %v287 = vsel %vm271, %v284, %v286
    %288 = vst.msk [vmem:[#allocation2] sm:$0xff] %vm273, %v287
    // Predicated region
    $region10: #{tpu_custom_call.1} parent=1 // pred_check
      _
    $region11: #{tpu_custom_call.1} parent=1 // pred_check_branch
      %290 = sbr.rel (0) target = $region13
    $region12: #{tpu_custom_call.1} parent=1 // pred_region
      %s292 = ssub.s32 128, 128
      %293 = vsyncadd [#allocation3], %s292
      %s295 = sshll.u32 [#allocation2], 4
      %s296 = int_to_ptr.vmem [resolvable:$true] %s295
      %298 = dma.vmem_to_hbm [thread:$0]  %s296, 128, %s2, [#allocation3]
    $region13: #{tpu_custom_call.1} parent=1 // pred_fallthru
      _
    // Predicated region
    $region14: #{tpu_custom_call.1} parent=1 // pred_check
      _
    $region15: #{tpu_custom_call.1} parent=1 // pred_check_branch
      %300 = sbr.rel (0) target = $region17
    $region16: #{tpu_custom_call.1} parent=1 // pred_region
      %301 = dma.done [#allocation3], 128
    $region17: #{tpu_custom_call.1} parent=1 // pred_fallthru
      _
    %302 = vsyncpa [#allocation3], 1

</llo_original>
